<compile_context>
chip_gen: v5e
topology: v5e:2x2
jax: 0.10.0
libtpu: 0.0.40
codegen_flags: <defaults>
</compile_context>

<pallas_src>
import functools

import jax
import jax.numpy as jnp
from jax.experimental import pallas as pl
from jax.experimental.pallas import tpu as pltpu


def _fourier_kan_kernel(x_ref, w_ref, b_ref, o_ref, *, gridsize):
    # x_ref: (tn, D) f32      input tile
    # w_ref: (2*D*G, O)       stacked [Wc; Ws], rows ordered (g*D + i); f32 or bf16
    # b_ref: (1, O) f32       bias (zeros if addbias=False)
    # o_ref: (tn, O) f32      output tile
    x = x_ref[...]

    # Base harmonic via EUP, higher harmonics via VPU angle-addition recurrence:
    #   cos((k+1)x) = cos(kx)cos(x) - sin(kx)sin(x)
    #   sin((k+1)x) = sin(kx)cos(x) + cos(kx)sin(x)
    c1 = jnp.cos(x)
    s1 = jnp.sin(x)
    cos_slabs = [c1]
    sin_slabs = [s1]
    ck, sk = c1, s1
    for _ in range(gridsize - 1):
        ck, sk = ck * c1 - sk * s1, sk * c1 + ck * s1
        cos_slabs.append(ck)
        sin_slabs.append(sk)

    # Lane-axis concat of 2-D slabs (no 3-D reshape); order matches weight rows.
    feat = jnp.concatenate(cos_slabs + sin_slabs, axis=1)  # (tn, 2*D*G)

    # Single fused MXU matmul, f32 accumulation.  Cast features to the weight
    # dtype at the dot only (bf16 on v6e/v7x; f32 path also supported).
    y = jnp.dot(feat.astype(w_ref.dtype), w_ref[...],
                preferred_element_type=jnp.float32)
    y = y + b_ref[...]  # (1, O) broadcasts over rows
    o_ref[...] = y.astype(o_ref.dtype)


def _choose_row_tile(n, inputdim, outdim, gridsize):
    """Pick the largest row tile that comfortably fits per-step VMEM.

    Budget is conservative for v7x (64 MiB physical, 32 MiB scoped default) and
    therefore also fine on v5e/v6e (128 MiB).  Weights + bias are resident and
    tiny; the dominant per-step live data is the feature matrix.
    """
    budget_bytes = 24 * 1024 * 1024
    per_row = (
        2 * inputdim * 4                    # x block, double-buffered f32
        + 2 * outdim * 4                    # out block, double-buffered f32
        + 2 * inputdim * gridsize * (4 + 2) # f32 feature slabs + bf16 cast copy
        + 6 * inputdim * 4                  # recurrence temporaries
    )
    tn = min(2048, max(8, budget_bytes // per_row))
    # Don't make the tile bigger than the (row-padded) problem.
    tn = min(tn, ((n + 7) // 8) * 8)
    tn = max(8, (tn // 8) * 8)
    # Note: for large N this yields a multi-step grid (>= 2 tiles), which lets
    # v7x's two TensorCores both get work via dimension_semantics=("parallel",).
    return tn


def prepare_fourier_kan_weights(fouriercoeffs, gridsize, matmul_dtype=jnp.bfloat16):
    """Hoisted weight preparation (do once, reuse across forward calls).

    fouriercoeffs: (2, outdim, inputdim, initial_gridsize) f32
    Returns stacked weights of shape (2*gridsize*inputdim, outdim) with row
    index (g*inputdim + i), cos block first then sin block, cast to matmul_dtype.
    """
    _, outdim, inputdim, init_g = fouriercoeffs.shape
    if gridsize != init_g:
        # TODO(synk): PyTorch broadcasting also allows gridsize==1 with init_g>1
        # (degenerate case); we only support the standard gridsize==initial_gridsize.
        raise ValueError(
            f"gridsize ({gridsize}) must match coefficient grid dim ({init_g})")
    # Wc[o, i, g] -> rows g*D + i   (matches cos-slab lane concat order in kernel)
    wc = jnp.transpose(fouriercoeffs[0], (2, 1, 0)).reshape(gridsize * inputdim, outdim)
    ws = jnp.transpose(fouriercoeffs[1], (2, 1, 0)).reshape(gridsize * inputdim, outdim)
    return jnp.concatenate([wc, ws], axis=0).astype(matmul_dtype)


def fourier_kan_forward(x, w_stacked, bias, *, inputdim, outdim, gridsize):
    """JAX/Pallas forward matching NaiveFourierKANLayer.forward.

    x:         (..., inputdim) float
    w_stacked: (2*gridsize*inputdim, outdim) from prepare_fourier_kan_weights
    bias:      (1, outdim) or None
    """
    original_shape = x.shape
    xf = x.reshape(-1, inputdim).astype(jnp.float32)
    n = xf.shape[0]

    tn = _choose_row_tile(n, inputdim, outdim, gridsize)
    n_pad = ((n + tn - 1) // tn) * tn
    if n_pad != n:
        xf = jnp.pad(xf, ((0, n_pad - n), (0, 0)))

    b = bias if bias is not None else jnp.zeros((1, outdim), jnp.float32)
    b = b.astype(jnp.float32).reshape(1, outdim)

    kernel = functools.partial(_fourier_kan_kernel, gridsize=gridsize)

    # TODO(synk): outdim=32 makes the output lane-sparse (masked stores, MXU
    # columns underfilled); packing several layers/heads into a >=128-lane output
    # slab would help if this layer is deployed standalone with tiny outdim.
    out = pl.pallas_call(
        kernel,
        out_shape=jax.ShapeDtypeStruct((n_pad, outdim), jnp.float32),
        grid_spec=pltpu.PrefetchScalarGridSpec(
            num_scalar_prefetch=0,
            grid=(n_pad // tn,),
            in_specs=[
                pl.BlockSpec((tn, inputdim), lambda i: (i, 0)),
                pl.BlockSpec((2 * inputdim * gridsize, outdim), lambda i: (0, 0)),
                pl.BlockSpec((1, outdim), lambda i: (0, 0)),
            ],
            out_specs=pl.BlockSpec((tn, outdim), lambda i: (i, 0)),
        ),
        compiler_params=pltpu.CompilerParams(
            dimension_semantics=("parallel",)),
    )(xf, w_stacked, b)

    out = out[:n]
    return out.reshape(*original_shape[:-1], outdim)


def fourier_kan_reference(x, fouriercoeffs, gridsize_param, bias=None):
    """Pure-JAX reference (direct transliteration of the PyTorch forward)."""
    _, outdim, inputdim, _ = fouriercoeffs.shape
    gridsize = int(round(max(float(gridsize_param), 1.0)))
    orig = x.shape
    xf = x.reshape(-1, inputdim)
    k = jnp.arange(1, gridsize + 1, dtype=jnp.float32).reshape(1, 1, 1, gridsize)
    xr = xf.reshape(xf.shape[0], 1, inputdim, 1)
    c = jnp.cos(k * xr)
    s = jnp.sin(k * xr)
    y = jnp.sum(c * fouriercoeffs[0:1], axis=(-2, -1))
    y = y + jnp.sum(s * fouriercoeffs[1:2], axis=(-2, -1))
    if bias is not None:
        y = y + bias
    return y.reshape(*orig[:-1], outdim)


if __name__ == "__main__":
    # Module config (small, consistent with the layer: last dim = inputdim)
    inputdim = 16
    outdim = 32
    initial_gridsize = 10
    batch, seq = 2, 4  # x: (batch, seq, inputdim)

    key = jax.random.PRNGKey(0)
    kx, kw = jax.random.split(key)

    # Deterministic parameter init (xavier_uniform bound for the 4D coeff tensor)
    recfield = inputdim * initial_gridsize
    fan_in = outdim * recfield
    fan_out = 2 * recfield
    bound = (6.0 / (fan_in + fan_out)) ** 0.5
    fouriercoeffs = jax.random.uniform(
        kw, (2, outdim, inputdim, initial_gridsize),
        minval=-bound, maxval=bound, dtype=jnp.float32)
    gridsize_param = float(initial_gridsize)
    bias = jnp.zeros((1, outdim), jnp.float32)

    x = jax.random.normal(kx, (batch, seq, inputdim), dtype=jnp.float32)

    # gridsize = clamp(param, min=1).round().int()  -- static (shapes depend on it)
    gridsize = int(round(max(gridsize_param, 1.0)))

    y_ref = fourier_kan_reference(x, fouriercoeffs, gridsize_param, bias)

    # 1) f32-matmul path: tight correctness check of recurrence + fused matmul.
    w_f32 = prepare_fourier_kan_weights(fouriercoeffs, gridsize, jnp.float32)
    y_f32 = fourier_kan_forward(x, w_f32, bias, inputdim=inputdim,
                                outdim=outdim, gridsize=gridsize)
    y_f32 = jax.block_until_ready(y_f32)
    assert y_f32.shape == (batch, seq, outdim)
    assert jnp.allclose(y_f32, y_ref, atol=2e-4, rtol=2e-4)

    # 2) bf16-at-the-dot path (v6e/v7x MXU fast path): looser tolerance.
    w_bf16 = prepare_fourier_kan_weights(fouriercoeffs, gridsize, jnp.bfloat16)
    y_bf16 = fourier_kan_forward(x, w_bf16, bias, inputdim=inputdim,
                                 outdim=outdim, gridsize=gridsize)
    y_bf16 = jax.block_until_ready(y_bf16)
    assert y_bf16.shape == (batch, seq, outdim)
    assert jnp.allclose(y_bf16, y_ref, atol=3e-2, rtol=3e-2)

    print("KERNEL_OK")
</pallas_src>

<mosaic_0001>
module attributes {stable_mosaic.version = 11 : i64} {
  func.func @_fourier_kan_kernel(%arg0: i32, %arg1: memref<8x16xf32, #tpu.memory_space<vmem>>, %arg2: memref<320x32xf32, #tpu.memory_space<vmem>>, %arg3: memref<1x32xf32, #tpu.memory_space<vmem>>, %arg4: memref<8x32xf32, #tpu.memory_space<vmem>>) attributes {dimension_semantics = [#tpu.dimension_semantics<parallel>], iteration_bounds = array<i64: 1>, scalar_prefetch = 0 : i64, scratch_operands = 0 : i64, tpu.core_type = #tpu.core_type<tc>, window_params = [{transform_indices = @transform_0, window_bounds = array<i64: 8, 16>}, {pipeline_mode = #tpu.pipeline_mode<synchronous>, transform_indices = @transform_1, window_bounds = array<i64: 320, 32>}, {pipeline_mode = #tpu.pipeline_mode<synchronous>, transform_indices = @transform_2, window_bounds = array<i64: 1, 32>}, {transform_indices = @transform_3, window_bounds = array<i64: 8, 32>}]} {
    %c0 = arith.constant 0 : index
    %c0_0 = arith.constant 0 : index
    %0 = vector.load %arg1[%c0, %c0_0] : memref<8x16xf32, #tpu.memory_space<vmem>>, vector<8x16xf32>
    %1 = math.cos %0 : vector<8x16xf32>
    %2 = math.sin %0 : vector<8x16xf32>
    %3 = arith.mulf %1, %1 : vector<8x16xf32>
    %4 = arith.mulf %2, %2 : vector<8x16xf32>
    %5 = arith.subf %3, %4 : vector<8x16xf32>
    %6 = arith.mulf %2, %1 : vector<8x16xf32>
    %7 = arith.mulf %1, %2 : vector<8x16xf32>
    %8 = arith.addf %6, %7 : vector<8x16xf32>
    %9 = arith.mulf %5, %1 : vector<8x16xf32>
    %10 = arith.mulf %8, %2 : vector<8x16xf32>
    %11 = arith.subf %9, %10 : vector<8x16xf32>
    %12 = arith.mulf %8, %1 : vector<8x16xf32>
    %13 = arith.mulf %5, %2 : vector<8x16xf32>
    %14 = arith.addf %12, %13 : vector<8x16xf32>
    %15 = arith.mulf %11, %1 : vector<8x16xf32>
    %16 = arith.mulf %14, %2 : vector<8x16xf32>
    %17 = arith.subf %15, %16 : vector<8x16xf32>
    %18 = arith.mulf %14, %1 : vector<8x16xf32>
    %19 = arith.mulf %11, %2 : vector<8x16xf32>
    %20 = arith.addf %18, %19 : vector<8x16xf32>
    %21 = arith.mulf %17, %1 : vector<8x16xf32>
    %22 = arith.mulf %20, %2 : vector<8x16xf32>
    %23 = arith.subf %21, %22 : vector<8x16xf32>
    %24 = arith.mulf %20, %1 : vector<8x16xf32>
    %25 = arith.mulf %17, %2 : vector<8x16xf32>
    %26 = arith.addf %24, %25 : vector<8x16xf32>
    %27 = arith.mulf %23, %1 : vector<8x16xf32>
    %28 = arith.mulf %26, %2 : vector<8x16xf32>
    %29 = arith.subf %27, %28 : vector<8x16xf32>
    %30 = arith.mulf %26, %1 : vector<8x16xf32>
    %31 = arith.mulf %23, %2 : vector<8x16xf32>
    %32 = arith.addf %30, %31 : vector<8x16xf32>
    %33 = arith.mulf %29, %1 : vector<8x16xf32>
    %34 = arith.mulf %32, %2 : vector<8x16xf32>
    %35 = arith.subf %33, %34 : vector<8x16xf32>
    %36 = arith.mulf %32, %1 : vector<8x16xf32>
    %37 = arith.mulf %29, %2 : vector<8x16xf32>
    %38 = arith.addf %36, %37 : vector<8x16xf32>
    %39 = arith.mulf %35, %1 : vector<8x16xf32>
    %40 = arith.mulf %38, %2 : vector<8x16xf32>
    %41 = arith.subf %39, %40 : vector<8x16xf32>
    %42 = arith.mulf %38, %1 : vector<8x16xf32>
    %43 = arith.mulf %35, %2 : vector<8x16xf32>
    %44 = arith.addf %42, %43 : vector<8x16xf32>
    %45 = arith.mulf %41, %1 : vector<8x16xf32>
    %46 = arith.mulf %44, %2 : vector<8x16xf32>
    %47 = arith.subf %45, %46 : vector<8x16xf32>
    %48 = arith.mulf %44, %1 : vector<8x16xf32>
    %49 = arith.mulf %41, %2 : vector<8x16xf32>
    %50 = arith.addf %48, %49 : vector<8x16xf32>
    %51 = arith.mulf %47, %1 : vector<8x16xf32>
    %52 = arith.mulf %50, %2 : vector<8x16xf32>
    %53 = arith.subf %51, %52 : vector<8x16xf32>
    %54 = arith.mulf %50, %1 : vector<8x16xf32>
    %55 = arith.mulf %47, %2 : vector<8x16xf32>
    %56 = arith.addf %54, %55 : vector<8x16xf32>
    %57 = tpu.concatenate %1, %5, %11, %17, %23, %29, %35, %41, %47, %53, %2, %8, %14, %20, %26, %32 in 1 : vector<8x16xf32>, vector<8x16xf32>, vector<8x16xf32>, vector<8x16xf32>, vector<8x16xf32>, vector<8x16xf32>, vector<8x16xf32>, vector<8x16xf32>, vector<8x16xf32>, vector<8x16xf32>, vector<8x16xf32>, vector<8x16xf32>, vector<8x16xf32>, vector<8x16xf32>, vector<8x16xf32>, vector<8x16xf32> -> vector<8x256xf32>
    %58 = tpu.concatenate %38, %44, %50, %56 in 1 : vector<8x16xf32>, vector<8x16xf32>, vector<8x16xf32>, vector<8x16xf32> -> vector<8x64xf32>
    %59 = tpu.concatenate %57, %58 in 1 : vector<8x256xf32>, vector<8x64xf32> -> vector<8x320xf32>
    %c0_1 = arith.constant 0 : index
    %c0_2 = arith.constant 0 : index
    %60 = vector.load %arg2[%c0_1, %c0_2] : memref<320x32xf32, #tpu.memory_space<vmem>>, vector<320x32xf32>
    %cst = arith.constant dense<0.000000e+00> : vector<8x32xf32>
    %61 = tpu.matmul %59, %60, %cst {dimension_numbers = #tpu.dot_dimension_numbers<[1], [0], [0], [1], [0, 0, 1, 1], [], []>} : vector<8x320xf32>, vector<320x32xf32>, vector<8x32xf32> -> vector<8x32xf32>
    %c0_3 = arith.constant 0 : index
    %c0_4 = arith.constant 0 : index
    %62 = vector.load %arg3[%c0_3, %c0_4] : memref<1x32xf32, #tpu.memory_space<vmem>>, vector<1x32xf32>
    %63 = vector.broadcast %62 : vector<1x32xf32> to vector<8x32xf32>
    %64 = arith.addf %61, %63 : vector<8x32xf32>
    %c0_5 = arith.constant 0 : index
    %c0_6 = arith.constant 0 : index
    %65 = vector.load %arg4[%c0_5, %c0_6] : memref<8x32xf32, #tpu.memory_space<vmem>>, vector<8x32xf32>
    tpu.vector_store %arg4[%c0_5, %c0_6], %64 {strides = array<i32>} : memref<8x32xf32, #tpu.memory_space<vmem>>, vector<8x32xf32>,
    return
  }
  func.func @transform_0(%arg0: i32) -> (i32, i32) {
    %c0_i32 = arith.constant 0 : i32
    %c0_i32_0 = arith.constant 0 : i32
    return %arg0, %c0_i32 : i32, i32
  }
  func.func @transform_1(%arg0: i32) -> (i32, i32) {
    %c0_i32 = arith.constant 0 : i32
    %c0_i32_0 = arith.constant 0 : i32
    %c0_i32_1 = arith.constant 0 : i32
    return %c0_i32, %c0_i32_0 : i32, i32
  }
  func.func @transform_2(%arg0: i32) -> (i32, i32) {
    %c0_i32 = arith.constant 0 : i32
    %c0_i32_0 = arith.constant 0 : i32
    %c0_i32_1 = arith.constant 0 : i32
    return %c0_i32, %c0_i32_0 : i32, i32
  }
  func.func @transform_3(%arg0: i32) -> (i32, i32) {
    %c0_i32 = arith.constant 0 : i32
    %c0_i32_0 = arith.constant 0 : i32
    return %arg0, %c0_i32 : i32, i32
  }
}

</mosaic_0001>

<llo_original>
// kernel: tpu_custom_call.1
$region0: #{tpu_custom_call.1}
  #allocation0 [shape = 'u32[]', space=smem, size = 0x4, offset = 0x4, fixed_abs, tag = 'smem constant byte address 0x4 - core index']
  #allocation1 [shape = 'u32[72,128]{1,0:T(1,128)}', space=vmem, size = 0x9000, scoped, tag = 'internal scratch']
  %s0 = inlined_call_operand.vmem [shape: f32[8,16], index: 0, kind: input, shape index: {}]
  %s1 = inlined_call_operand.vmem [shape: f32[320,32], index: 1, kind: input, shape index: {}]
  %s2 = inlined_call_operand.vmem [shape: f32[1,32], index: 2, kind: input, shape index: {}]
  %s3 = inlined_call_operand.hbm [shape: f32[8,32], index: 3, kind: output, shape index: {}]
  %s4 = sld [smem:[#allocation0]]
  $region22: #{tpu_custom_call.1} parent=0
    _
  %s6 = ssub.s32 1, %s4
  %s7 = scalar_select 0, %s6, %s4
  $region1: #{tpu_custom_call.1} parent=0
    #allocation2 [shape = 'u8[4096]{0}', space=vmem, size = 0x1000, scoped, tag = 'output window, operand 0, single buffered']
    #allocation3 [shape = 's32[1]{0}', space=sflag, size = 0x4, scoped, tag = 'scoped memory for tpu_custom_call.1']
    %8 = vsyncpa [#allocation3], 0
    // Predicated region
    $region2: #{tpu_custom_call.1} parent=1 // pred_check
      _
    $region3: #{tpu_custom_call.1} parent=1 // pred_check_branch
      %10 = sbr.rel (0) target = $region5
    $region4: #{tpu_custom_call.1} parent=1 // pred_region
      _
    $region5: #{tpu_custom_call.1} parent=1 // pred_fallthru
      _
    // Predicated region
    $region6: #{tpu_custom_call.1} parent=1 // pred_check
      _
    $region7: #{tpu_custom_call.1} parent=1 // pred_check_branch
      %12 = sbr.rel (0) target = $region9
    $region8: #{tpu_custom_call.1} parent=1 // pred_region
      _
    $region9: #{tpu_custom_call.1} parent=1 // pred_fallthru
      _
    // Predicated region
    $region10: #{tpu_custom_call.1} parent=1 // pred_check
      _
    $region11: #{tpu_custom_call.1} parent=1 // pred_check_branch
      %14 = sbr.rel (0) target = $region13
    $region12: #{tpu_custom_call.1} parent=1 // pred_region
      _
    $region13: #{tpu_custom_call.1} parent=1 // pred_fallthru
      _
    %v15 = vld [vmem:[%s0] sm:$0xff]
    %v16 = vand.u32 2147483647, %v15
    %vm17 = vcmp.le.f32.partialorder %v16, 0.7853982
    %vm18 = vcmp.lt.s32.totalorder %v15, 0
    %v19 = vand.u32 %v15, 2139095040
    %v20 = vshrl.u32 %v19, 23
    %v21 = vsub.s32 %v20, 127
    %v22 = vand.u32 2147483647, %v15
    %v23 = vand.u32 %v22, 8388607
    %v24 = vor.u32 %v23, 8388608
    %v25 = vsub.s32 0, %v24
    %v26 = vadd.s32 %v21, 1
    %vm27 = vcmp.gt.s32.totalorder %v26, 0
    %v28 = vsel %vm27, %v26, 0
    %v29 = vshrl.u32 %v28, 5
    %v30 = vand.u32 %v28, 31
    %v31 = vsub.s32 32, %v30
    %v32 = vshrl.u32 683565275, %v31
    %v33 = vshll.u32 683565275, %v30
    %v34 = vshrl.u32 2475754826, %v31
    %v35 = vor.u32 %v33, %v34
    %v36 = vshll.u32 2475754826, %v30
    %v37 = vshrl.u32 2131351028, %v31
    %v38 = vor.u32 %v36, %v37
    %v39 = vshll.u32 2131351028, %v30
    %v40 = vshrl.u32 2102212464, %v31
    %v41 = vor.u32 %v39, %v40
    %v42 = vshll.u32 2102212464, %v30
    %v43 = vshrl.u32 920167782, %v31
    %v44 = vor.u32 %v42, %v43
    %v45 = vshll.u32 920167782, %v30
    %v46 = vshrl.u32 1326507024, %v31
    %v47 = vor.u32 %v45, %v46
    %vm48 = vcmp.lt.s32.totalorder %v29, 1
    %vm49 = vcmp.lt.s32.totalorder %v29, 2
    %vm50 = vcmp.lt.s32.totalorder %v29, 3
    %vm51 = vcmp.lt.s32.totalorder %v29, 4
    %v52 = vsel %vm48, %v32, %v35
    %v53 = vsel %vm51, %v41, 2102212464
    %v54 = vsel %vm50, %v38, %v53
    %v55 = vsel %vm49, %v52, %v54
    %v56 = vsel %vm48, %v35, %v38
    %v57 = vsel %vm51, %v44, 920167782
    %v58 = vsel %vm50, %v41, %v57
    %v59 = vsel %vm49, %v56, %v58
    %v60 = vsel %vm48, %v38, %v41
    %v61 = vsel %vm51, %v47, 1326507024
    %v62 = vsel %vm50, %v44, %v61
    %v63 = vsel %vm49, %v60, %v62
    %v64 = vshll.u32 %v24, 8
    %v65 = vand.u32 %v64, 65535
    %v66 = vshrl.u32 %v64, 16
    %v67 = vand.u32 %v63, 65535
    %v68 = vshrl.u32 %v63, 16
    %v69 = vmul.u32 %v65, %v67
    %v70 = vmul.u32 %v65, %v68
    %v71 = vmul.u32 %v66, %v67
    %v72 = vmul.u32 %v66, %v68
    %v73 = vshll.u32 %v70, 16
    %v74 = vshrl.u32 %v70, 16
    %v75 = vshll.u32 %v71, 16
    %v76 = vshrl.u32 %v71, 16
    %vm77 = vc.u32 %v69, %v73
    %v78 = vsel %vm77, 1, 0
    %v79 = vadd.s32 %v69, %v73
    %v80 = vadd.s32 %v72, %v78
    %vm81 = vc.u32 %v79, %v75
    %v82 = vsel %vm81, 1, 0
    %v83 = vadd.s32 %v79, %v75
    %v84 = vadd.s32 %v80, %v82
    %v85 = vadd.s32 %v84, %v74
    %v86 = vadd.s32 %v85, %v76
    %v87 = vand.u32 %v64, 65535
    %v88 = vshrl.u32 %v64, 16
    %v89 = vand.u32 %v59, 65535
    %v90 = vshrl.u32 %v59, 16
    %v91 = vmul.u32 %v87, %v89
    %v92 = vmul.u32 %v87, %v90
    %v93 = vmul.u32 %v88, %v89
    %v94 = vmul.u32 %v88, %v90
    %v95 = vshll.u32 %v92, 16
    %v96 = vshrl.u32 %v92, 16
    %v97 = vshll.u32 %v93, 16
    %v98 = vshrl.u32 %v93, 16
    %vm99 = vc.u32 %v91, %v95
    %v100 = vsel %vm99, 1, 0
    %v101 = vadd.s32 %v91, %v95
    %v102 = vadd.s32 %v94, %v100
    %vm103 = vc.u32 %v101, %v97
    %v104 = vsel %vm103, 1, 0
    %v105 = vadd.s32 %v101, %v97
    %v106 = vadd.s32 %v102, %v104
    %v107 = vadd.s32 %v106, %v96
    %v108 = vadd.s32 %v107, %v98
    %v109 = vmul.u32 %v64, %v55
    %v110 = vadd.s32 %v86, %v105
    %vm111 = vc.u32 %v86, %v105
    %v112 = vadd.s32 %v108, 1
    %v113 = vsel %vm111, %v112, %v108
    %v114 = vadd.s32 %v109, %v113
    %v115 = vadd.s32 %v114, 536870912
    %v116 = vshrl.u32 %v115, 30
    %v117 = vshll.u32 %v116, 30
    %v118 = vsub.s32 %v114, %v117
    %vm119 = vcmp.lt.s32.totalorder %v118, 0
    %v120 = vsub.s32 0, %v118
    %v121 = vsel %vm119, %v120, %v118
    %v122 = vclz %v121
    %v123 = vsub.s32 %v122, 2
    %vm124 = vcmp.gt.s32.totalorder 0, %v123
    %v125 = vsel %vm124, 0, %v123
    %v126 = vsub.s32 32, %v125
    %v127 = vshll.u32 %v118, %v125
    %v128 = vshrl.u32 %v110, %v126
    %v129 = vor.u32 %v127, %v128
    %v130 = vsub.s32 4294967266, %v125
    %v131 = vadd.s32 %v130, 127
    %v132 = vshll.u32 %v131, 23
    %v133 = vor.u32 4788187, %v132
    %v134 = vand.u32 2147483647, %v133
    %v136 = vcvt.s32.f32 %v129
    %v137 = vmul.f32 %v136, %v134
    %v138 = vxor.u32 %v137, 2147483648
    %v139 = vsel %vm18, %v138, %v137
    %v140 = vsub.s32 4, %v116
    %v141 = vsel %vm18, %v140, %v116
    %v142 = vsel %vm17, %v15, %v139
    %v143 = vsel %vm17, 0, %v141
    %v144 = vmul.f32 %v142, %v142
    %v145 = vmul.f32 %v144, -0.001358992
    %v146 = vadd.f32 %v145, 0.041655596
    %v147 = vmul.f32 %v144, %v146
    %v148 = vadd.f32 %v147, -0.4999988
    %v149 = vmul.f32 %v144, %v148
    %v150 = vadd.f32 1.0, %v149
    %v151 = vmul.f32 %v142, %v142
    %v152 = vmul.f32 %v151, -0.00019511016
    %v153 = vadd.f32 %v152, 0.008332121
    %v154 = vmul.f32 %v151, %v153
    %v155 = vadd.f32 %v154, -0.16666654
    %v156 = vmul.f32 %v151, %v155
    %v157 = vadd.f32 %v156, 1.0
    %v158 = vmul.f32 %v157, %v142
    %vm159 = vweird.f32 %v15
    %v160 = vand.u32 %v143, 3
    %vm161 = vcmp.lt.s32.totalorder %v160, 2
    %vm162 = vcmp.eq.s32.totalorder %v160, 0
    %v163 = vxor.u32 %v158, 2147483648
    %v164 = vsel %vm162, %v150, %v163
    %vm165 = vcmp.eq.s32.totalorder %v160, 2
    %v166 = vxor.u32 %v150, 2147483648
    %v167 = vsel %vm165, %v166, %v158
    %v168 = vsel %vm161, %v164, %v167
    %v169 = vsel %vm159, nan, %v168
    %v170 = vand.u32 2147483647, %v15
    %vm171 = vcmp.le.f32.partialorder %v170, 0.7853982
    %vm172 = vcmp.lt.s32.totalorder %v15, 0
    %v173 = vand.u32 %v15, 2139095040
    %v174 = vshrl.u32 %v173, 23
    %v175 = vsub.s32 %v174, 127
    %v176 = vand.u32 2147483647, %v15
    %v177 = vand.u32 %v176, 8388607
    %v178 = vor.u32 %v177, 8388608
    %v179 = vsub.s32 0, %v178
    %v180 = vadd.s32 %v175, 1
    %vm181 = vcmp.gt.s32.totalorder %v180, 0
    %v182 = vsel %vm181, %v180, 0
    %v183 = vshrl.u32 %v182, 5
    %v184 = vand.u32 %v182, 31
    %v185 = vsub.s32 32, %v184
    %v186 = vshrl.u32 683565275, %v185
    %v187 = vshll.u32 683565275, %v184
    %v188 = vshrl.u32 2475754826, %v185
    %v189 = vor.u32 %v187, %v188
    %v190 = vshll.u32 2475754826, %v184
    %v191 = vshrl.u32 2131351028, %v185
    %v192 = vor.u32 %v190, %v191
    %v193 = vshll.u32 2131351028, %v184
    %v194 = vshrl.u32 2102212464, %v185
    %v195 = vor.u32 %v193, %v194
    %v196 = vshll.u32 2102212464, %v184
    %v197 = vshrl.u32 920167782, %v185
    %v198 = vor.u32 %v196, %v197
    %v199 = vshll.u32 920167782, %v184
    %v200 = vshrl.u32 1326507024, %v185
    %v201 = vor.u32 %v199, %v200
    %vm202 = vcmp.lt.s32.totalorder %v183, 1
    %vm203 = vcmp.lt.s32.totalorder %v183, 2
    %vm204 = vcmp.lt.s32.totalorder %v183, 3
    %vm205 = vcmp.lt.s32.totalorder %v183, 4
    %v206 = vsel %vm202, %v186, %v189
    %v207 = vsel %vm205, %v195, 2102212464
    %v208 = vsel %vm204, %v192, %v207
    %v209 = vsel %vm203, %v206, %v208
    %v210 = vsel %vm202, %v189, %v192
    %v211 = vsel %vm205, %v198, 920167782
    %v212 = vsel %vm204, %v195, %v211
    %v213 = vsel %vm203, %v210, %v212
    %v214 = vsel %vm202, %v192, %v195
    %v215 = vsel %vm205, %v201, 1326507024
    %v216 = vsel %vm204, %v198, %v215
    %v217 = vsel %vm203, %v214, %v216
    %v218 = vshll.u32 %v178, 8
    %v219 = vand.u32 %v218, 65535
    %v220 = vshrl.u32 %v218, 16
    %v221 = vand.u32 %v217, 65535
    %v222 = vshrl.u32 %v217, 16
    %v223 = vmul.u32 %v219, %v221
    %v224 = vmul.u32 %v219, %v222
    %v225 = vmul.u32 %v220, %v221
    %v226 = vmul.u32 %v220, %v222
    %v227 = vshll.u32 %v224, 16
    %v228 = vshrl.u32 %v224, 16
    %v229 = vshll.u32 %v225, 16
    %v230 = vshrl.u32 %v225, 16
    %vm231 = vc.u32 %v223, %v227
    %v232 = vsel %vm231, 1, 0
    %v233 = vadd.s32 %v223, %v227
    %v234 = vadd.s32 %v226, %v232
    %vm235 = vc.u32 %v233, %v229
    %v236 = vsel %vm235, 1, 0
    %v237 = vadd.s32 %v233, %v229
    %v238 = vadd.s32 %v234, %v236
    %v239 = vadd.s32 %v238, %v228
    %v240 = vadd.s32 %v239, %v230
    %v241 = vand.u32 %v218, 65535
    %v242 = vshrl.u32 %v218, 16
    %v243 = vand.u32 %v213, 65535
    %v244 = vshrl.u32 %v213, 16
    %v245 = vmul.u32 %v241, %v243
    %v246 = vmul.u32 %v241, %v244
    %v247 = vmul.u32 %v242, %v243
    %v248 = vmul.u32 %v242, %v244
    %v249 = vshll.u32 %v246, 16
    %v250 = vshrl.u32 %v246, 16
    %v251 = vshll.u32 %v247, 16
    %v252 = vshrl.u32 %v247, 16
    %vm253 = vc.u32 %v245, %v249
    %v254 = vsel %vm253, 1, 0
    %v255 = vadd.s32 %v245, %v249
    %v256 = vadd.s32 %v248, %v254
    %vm257 = vc.u32 %v255, %v251
    %v258 = vsel %vm257, 1, 0
    %v259 = vadd.s32 %v255, %v251
    %v260 = vadd.s32 %v256, %v258
    %v261 = vadd.s32 %v260, %v250
    %v262 = vadd.s32 %v261, %v252
    %v263 = vmul.u32 %v218, %v209
    %v264 = vadd.s32 %v240, %v259
    %vm265 = vc.u32 %v240, %v259
    %v266 = vadd.s32 %v262, 1
    %v267 = vsel %vm265, %v266, %v262
    %v268 = vadd.s32 %v263, %v267
    %v269 = vadd.s32 %v268, 536870912
    %v270 = vshrl.u32 %v269, 30
    %v271 = vshll.u32 %v270, 30
    %v272 = vsub.s32 %v268, %v271
    %vm273 = vcmp.lt.s32.totalorder %v272, 0
    %v274 = vsub.s32 0, %v272
    %v275 = vsel %vm273, %v274, %v272
    %v276 = vclz %v275
    %v277 = vsub.s32 %v276, 2
    %vm278 = vcmp.gt.s32.totalorder 0, %v277
    %v279 = vsel %vm278, 0, %v277
    %v280 = vsub.s32 32, %v279
    %v281 = vshll.u32 %v272, %v279
    %v282 = vshrl.u32 %v264, %v280
    %v283 = vor.u32 %v281, %v282
    %v284 = vsub.s32 4294967266, %v279
    %v285 = vadd.s32 %v284, 127
    %v286 = vshll.u32 %v285, 23
    %v287 = vor.u32 4788187, %v286
    %v288 = vand.u32 2147483647, %v287
    %v290 = vcvt.s32.f32 %v283
    %v291 = vmul.f32 %v290, %v288
    %v292 = vxor.u32 %v291, 2147483648
    %v293 = vsel %vm172, %v292, %v291
    %v294 = vsub.s32 4, %v270
    %v295 = vsel %vm172, %v294, %v270
    %v296 = vsel %vm171, %v15, %v293
    %v297 = vsel %vm171, 0, %v295
    %v298 = vmul.f32 %v296, %v296
    %v299 = vmul.f32 %v298, -0.001358992
    %v300 = vadd.f32 %v299, 0.041655596
    %v301 = vmul.f32 %v298, %v300
    %v302 = vadd.f32 %v301, -0.4999988
    %v303 = vmul.f32 %v298, %v302
    %v304 = vadd.f32 1.0, %v303
    %v305 = vmul.f32 %v296, %v296
    %v306 = vmul.f32 %v305, -0.00019511016
    %v307 = vadd.f32 %v306, 0.008332121
    %v308 = vmul.f32 %v305, %v307
    %v309 = vadd.f32 %v308, -0.16666654
    %v310 = vmul.f32 %v305, %v309
    %v311 = vadd.f32 %v310, 1.0
    %v312 = vmul.f32 %v311, %v296
    %vm313 = vweird.f32 %v15
    %v314 = vadd.s32 %v297, 3
    %v315 = vand.u32 %v314, 3
    %vm316 = vcmp.lt.s32.totalorder %v315, 2
    %vm317 = vcmp.eq.s32.totalorder %v315, 0
    %v318 = vxor.u32 %v312, 2147483648
    %v319 = vsel %vm317, %v304, %v318
    %vm320 = vcmp.eq.s32.totalorder %v315, 2
    %v321 = vxor.u32 %v304, 2147483648
    %v322 = vsel %vm320, %v321, %v312
    %v323 = vsel %vm316, %v319, %v322
    %v324 = vsel %vm313, nan, %v323
    %v325 = vmul.f32 %v169, %v169
    %v326 = vmul.f32 %v324, %v324
    %v327 = vsub.f32 %v325, %v326
    %v328 = vmul.f32 %v324, %v169
    %v329 = vadd.f32 %v328, %v328
    %v330 = vmul.f32 %v327, %v169
    %v331 = vmul.f32 %v329, %v324
    %v332 = vsub.f32 %v330, %v331
    %v333 = vmul.f32 %v329, %v169
    %v334 = vmul.f32 %v327, %v324
    %v335 = vadd.f32 %v333, %v334
    %v336 = vmul.f32 %v332, %v169
    %v337 = vmul.f32 %v335, %v324
    %v338 = vsub.f32 %v336, %v337
    %v339 = vmul.f32 %v335, %v169
    %v340 = vmul.f32 %v332, %v324
    %v341 = vadd.f32 %v339, %v340
    %v342 = vmul.f32 %v338, %v169
    %v343 = vmul.f32 %v341, %v324
    %v344 = vsub.f32 %v342, %v343
    %v345 = vmul.f32 %v341, %v169
    %v346 = vmul.f32 %v338, %v324
    %v347 = vadd.f32 %v345, %v346
    %v348 = vmul.f32 %v344, %v169
    %v349 = vmul.f32 %v347, %v324
    %v350 = vsub.f32 %v348, %v349
    %v351 = vmul.f32 %v347, %v169
    %v352 = vmul.f32 %v344, %v324
    %v353 = vadd.f32 %v351, %v352
    %v354 = vmul.f32 %v350, %v169
    %v355 = vmul.f32 %v353, %v324
    %v356 = vsub.f32 %v354, %v355
    %v357 = vmul.f32 %v353, %v169
    %v358 = vmul.f32 %v350, %v324
    %v359 = vadd.f32 %v357, %v358
    %v360 = vmul.f32 %v356, %v169
    %v361 = vmul.f32 %v359, %v324
    %v362 = vsub.f32 %v360, %v361
    %v363 = vmul.f32 %v359, %v169
    %v364 = vmul.f32 %v356, %v324
    %v365 = vadd.f32 %v363, %v364
    %v366 = vmul.f32 %v362, %v169
    %v367 = vmul.f32 %v365, %v324
    %v368 = vsub.f32 %v366, %v367
    %v369 = vmul.f32 %v365, %v169
    %v370 = vmul.f32 %v362, %v324
    %v371 = vadd.f32 %v369, %v370
    %v372 = vmul.f32 %v368, %v169
    %v373 = vmul.f32 %v371, %v324
    %v374 = vsub.f32 %v372, %v373
    %v375 = vmul.f32 %v371, %v169
    %v376 = vmul.f32 %v368, %v324
    %v377 = vadd.f32 %v375, %v376
    %379 = vrot.lane.b32.xlu0 %v327, 16
    %v380 = vpop.permute.xlu0 %379
    %383 = vrot.lane.b32.xlu0 %v332, 32
    %v384 = vpop.permute.xlu0 %383
    %387 = vrot.lane.b32.xlu0 %v338, 48
    %v388 = vpop.permute.xlu0 %387
    %391 = vrot.lane.b32.xlu0 %v344, 64
    %v392 = vpop.permute.xlu0 %391
    %395 = vrot.lane.b32.xlu0 %v350, 80
    %v396 = vpop.permute.xlu0 %395
    %399 = vrot.lane.b32.xlu0 %v356, 96
    %v400 = vpop.permute.xlu0 %399
    %403 = vrot.lane.b32.xlu0 %v362, 112
    %v404 = vpop.permute.xlu0 %403
    %407 = vrot.lane.b32.xlu0 %v374, 16
    %v408 = vpop.permute.xlu0 %407
    %411 = vrot.lane.b32.xlu0 %v324, 32
    %v412 = vpop.permute.xlu0 %411
    %415 = vrot.lane.b32.xlu0 %v329, 48
    %v416 = vpop.permute.xlu0 %415
    %419 = vrot.lane.b32.xlu0 %v335, 64
    %v420 = vpop.permute.xlu0 %419
    %423 = vrot.lane.b32.xlu0 %v341, 80
    %v424 = vpop.permute.xlu0 %423
    %427 = vrot.lane.b32.xlu0 %v347, 96
    %v428 = vpop.permute.xlu0 %427
    %431 = vrot.lane.b32.xlu0 %v353, 112
    %v432 = vpop.permute.xlu0 %431
    %vm434 = vcmask 130048
    %v435 = vsel %vm434, %v169, %v380
    %vm436 = vcmask 261120
    %v437 = vsel %vm436, %v435, %v384
    %vm438 = vcmask 392192
    %v439 = vsel %vm438, %v437, %v388
    %vm440 = vcmask 523264
    %v441 = vsel %vm440, %v439, %v392
    %vm442 = vcmask 654336
    %v443 = vsel %vm442, %v441, %v396
    %vm444 = vcmask 785408
    %v445 = vsel %vm444, %v443, %v400
    %vm446 = vcmask 916480
    %v447 = vsel %vm446, %v445, %v404
    %v448 = vsel %vm434, %v368, %v408
    %v449 = vsel %vm436, %v448, %v412
    %v450 = vsel %vm438, %v449, %v416
    %v451 = vsel %vm440, %v450, %v420
    %v452 = vsel %vm442, %v451, %v424
    %v453 = vsel %vm444, %v452, %v428
    %v454 = vsel %vm446, %v453, %v432
    %456 = vrot.lane.b32.xlu0 %v365, 16
    %v457 = vpop.permute.xlu0 %456
    %460 = vrot.lane.b32.xlu0 %v371, 32
    %v461 = vpop.permute.xlu0 %460
    %464 = vrot.lane.b32.xlu0 %v377, 48
    %v465 = vpop.permute.xlu0 %464
    %v467 = vsel %vm434, %v359, %v457
    %v468 = vsel %vm436, %v467, %v461
    %v469 = vsel %vm438, %v468, %v465
    %v470 = vld [vmem:[%s1] sm:$0xff]
    %v471 = vld [vmem:[%s1 + $0x8] sm:$0xff]
    %v472 = vld [vmem:[%s1 + $0x10] sm:$0xff]
    %v473 = vld [vmem:[%s1 + $0x18] sm:$0xff]
    %v474 = vld [vmem:[%s1 + $0x20] sm:$0xff]
    %v475 = vld [vmem:[%s1 + $0x28] sm:$0xff]
    %v476 = vld [vmem:[%s1 + $0x30] sm:$0xff]
    %v477 = vld [vmem:[%s1 + $0x38] sm:$0xff]
    %v478 = vld [vmem:[%s1 + $0x40] sm:$0xff]
    %v479 = vld [vmem:[%s1 + $0x48] sm:$0xff]
    %v480 = vld [vmem:[%s1 + $0x50] sm:$0xff]
    %v481 = vld [vmem:[%s1 + $0x58] sm:$0xff]
    %v482 = vld [vmem:[%s1 + $0x60] sm:$0xff]
    %v483 = vld [vmem:[%s1 + $0x68] sm:$0xff]
    %v484 = vld [vmem:[%s1 + $0x70] sm:$0xff]
    %v485 = vld [vmem:[%s1 + $0x78] sm:$0xff]
    %v486 = vld [vmem:[%s1 + $0x80] sm:$0xff]
    %v487 = vld [vmem:[%s1 + $0x88] sm:$0xff]
    %v488 = vld [vmem:[%s1 + $0x90] sm:$0xff]
    %v489 = vld [vmem:[%s1 + $0x98] sm:$0xff]
    %v490 = vld [vmem:[%s1 + $0xa0] sm:$0xff]
    %v491 = vld [vmem:[%s1 + $0xa8] sm:$0xff]
    %v492 = vld [vmem:[%s1 + $0xb0] sm:$0xff]
    %v493 = vld [vmem:[%s1 + $0xb8] sm:$0xff]
    %v494 = vld [vmem:[%s1 + $0xc0] sm:$0xff]
    %v495 = vld [vmem:[%s1 + $0xc8] sm:$0xff]
    %v496 = vld [vmem:[%s1 + $0xd0] sm:$0xff]
    %v497 = vld [vmem:[%s1 + $0xd8] sm:$0xff]
    %v498 = vld [vmem:[%s1 + $0xe0] sm:$0xff]
    %v499 = vld [vmem:[%s1 + $0xe8] sm:$0xff]
    %v500 = vld [vmem:[%s1 + $0xf0] sm:$0xff]
    %v501 = vld [vmem:[%s1 + $0xf8] sm:$0xff]
    %v502 = vld [vmem:[%s1 + $0x100] sm:$0xff]
    %v503 = vld [vmem:[%s1 + $0x108] sm:$0xff]
    %v504 = vld [vmem:[%s1 + $0x110] sm:$0xff]
    %v505 = vld [vmem:[%s1 + $0x118] sm:$0xff]
    %v506 = vld [vmem:[%s1 + $0x120] sm:$0xff]
    %v507 = vld [vmem:[%s1 + $0x128] sm:$0xff]
    %v508 = vld [vmem:[%s1 + $0x130] sm:$0xff]
    %v509 = vld [vmem:[%s1 + $0x138] sm:$0xff]
    %v510 = vld [vmem:[%s2] sm:$0x1]
    %v512 = vperm.slane %v510, 0
    %v515 = vsel %vm440, %v469, 0
    %517 = vmatpush.msra.mxu0 %v485
    %518 = vmatpush.msra.mxu0 %v484
    %519 = vmatpush.msra.mxu0 %v483
    %520 = vmatpush.msra.mxu0 %v482
    %521 = vmatpush.msra.mxu0 %v481
    %522 = vmatpush.msra.mxu0 %v480
    %523 = vmatpush.msra.mxu0 %v479
    %524 = vmatpush.msra.mxu0 %v478
    %525 = vmatpush.msra.mxu0 %v477
    %526 = vmatpush.msra.mxu0 %v476
    %527 = vmatpush.msra.mxu0 %v475
    %528 = vmatpush.msra.mxu0 %v474
    %529 = vmatpush.msra.mxu0 %v473
    %530 = vmatpush.msra.mxu0 %v472
    %531 = vmatpush.msra.mxu0 %v471
    %532 = vmatpush.msra.mxu0 %v470
    %533 = vmatmul.f32.gmra.mxu0 %v447
    %v534 = vpop.f32.mrf.mxu0
    %v535 = vadd.f32 %v512, %v534
    %536 = vdwg.mxu0
    %537 = vmatpush.msra.mxu0 %v501
    %538 = vmatpush.msra.mxu0 %v500
    %539 = vmatpush.msra.mxu0 %v499
    %540 = vmatpush.msra.mxu0 %v498
    %541 = vmatpush.msra.mxu0 %v497
    %542 = vmatpush.msra.mxu0 %v496
    %543 = vmatpush.msra.mxu0 %v495
    %544 = vmatpush.msra.mxu0 %v494
    %545 = vmatpush.msra.mxu0 %v493
    %546 = vmatpush.msra.mxu0 %v492
    %547 = vmatpush.msra.mxu0 %v491
    %548 = vmatpush.msra.mxu0 %v490
    %549 = vmatpush.msra.mxu0 %v489
    %550 = vmatpush.msra.mxu0 %v488
    %551 = vmatpush.msra.mxu0 %v487
    %552 = vmatpush.msra.mxu0 %v486
    %553 = vmatmul.f32.gmra.mxu0 %v454
    %v554 = vpop.f32.mrf.mxu0
    %v555 = vadd.f32 %v535, %v554
    %556 = vdwg.mxu0
    %557 = vmatpush.msra.mxu0 0.0
    %558 = vmatpush.msra.mxu0 0.0
    %559 = vmatpush.msra.mxu0 0.0
    %560 = vmatpush.msra.mxu0 0.0
    %561 = vmatpush.msra.mxu0 0.0
    %562 = vmatpush.msra.mxu0 0.0
    %563 = vmatpush.msra.mxu0 0.0
    %564 = vmatpush.msra.mxu0 0.0
    %565 = vmatpush.msra.mxu0 %v509
    %566 = vmatpush.msra.mxu0 %v508
    %567 = vmatpush.msra.mxu0 %v507
    %568 = vmatpush.msra.mxu0 %v506
    %569 = vmatpush.msra.mxu0 %v505
    %570 = vmatpush.msra.mxu0 %v504
    %571 = vmatpush.msra.mxu0 %v503
    %572 = vmatpush.msra.mxu0 %v502
    %573 = vmatmul.f32.gmra.mxu0 %v515
    %v574 = vpop.f32.mrf.mxu0
    %v575 = vadd.f32 %v555, %v574
    %576 = vdwg.mxu0
    %577 = vst.msk [vmem:[#allocation2] sm:$0xff] %vm436, %v575
    // Predicated region
    $region14: #{tpu_custom_call.1} parent=1 // pred_check
      _
    $region15: #{tpu_custom_call.1} parent=1 // pred_check_branch
      %579 = sbr.rel (0) target = $region17
    $region16: #{tpu_custom_call.1} parent=1 // pred_region
      %581 = vsyncadd [#allocation3], 0
      %s583 = sshll.u32 [#allocation2], 4
      %s584 = int_to_ptr.vmem [resolvable:$true] %s583
      %s585 = sshll.u32 %s3, 4
      %s586 = int_to_ptr.hbm [resolvable:$true] %s585
      %588 = dma.vmem_to_hbm [thread:$0]  %s584, 128, %s586, [#allocation3]
    $region17: #{tpu_custom_call.1} parent=1 // pred_fallthru
      _
    // Predicated region
    $region18: #{tpu_custom_call.1} parent=1 // pred_check
      _
    $region19: #{tpu_custom_call.1} parent=1 // pred_check_branch
      %590 = sbr.rel (0) target = $region21
    $region20: #{tpu_custom_call.1} parent=1 // pred_region
      %592 = dma.done [#allocation3], 128
    $region21: #{tpu_custom_call.1} parent=1 // pred_fallthru
      _
    %593 = vsyncpa [#allocation3], 1

</llo_original>
